<compile_context>
chip_gen: v6e
topology: v6e:2x2x1
jax: 0.10.0
libtpu: 0.0.40
codegen_flags: <defaults>
</compile_context>

<pallas_src>
import jax
import jax.numpy as jnp
from jax.experimental import pallas as pl
from jax.experimental.pallas import tpu as pltpu


# ----------------------------------------------------------------------------- kernel
def temporal_gcn_kernel(
    x_ref,      # [Nb, F]  bf16   packed node features (G graphs stacked)
    adj_ref,    # [Nb, Nb] bf16   block-diagonal normalized Â super-block
    tc_ref,     # [Nb, H]  f32    per-row time contribution  (te @ W1b, precomputed)
    w1a_ref,    # [F, H]   bf16   gcn_1 weight (x part), BN folded
    w23_ref,    # [2, H, H] bf16  gcn_2 / gcn_3 weights, BN folded
    b_ref,      # [3, H]   f32    folded BN shifts for layers 1..3
    out_ref,    # [Nb, H]  f32
):
    f32 = jnp.float32
    bf16 = jnp.bfloat16

    adj = adj_ref[...]                                                  # [Nb, Nb]

    # layer 1:  concat([x, rep(te)]) @ W1  ==  x @ W1a + (te @ W1b)[graph-of-row]
    m1 = jnp.dot(x_ref[...], w1a_ref[...],
                 preferred_element_type=f32) + tc_ref[...]              # [Nb, H]
    h1 = jnp.maximum(
        jnp.dot(adj, m1.astype(bf16), preferred_element_type=f32) + b_ref[0:1, :], 0.0)

    # layer 2
    m2 = jnp.dot(h1.astype(bf16), w23_ref[0], preferred_element_type=f32)
    h2 = jnp.maximum(
        jnp.dot(adj, m2.astype(bf16), preferred_element_type=f32) + b_ref[1:2, :], 0.0)

    # layer 3
    m3 = jnp.dot(h2.astype(bf16), w23_ref[1], preferred_element_type=f32)
    h3 = jnp.maximum(
        jnp.dot(adj, m3.astype(bf16), preferred_element_type=f32) + b_ref[2:3, :], 0.0)

    # attention = nn.Identity()
    out_ref[...] = h3.astype(out_ref.dtype)


# --------------------------------------------------------------------------- helpers
def xavier_uniform(key, fan_in, fan_out):
    """torch.nn.init.xavier_uniform_ on an [out,in] weight, returned as [in,out]."""
    bound = jnp.sqrt(6.0 / (fan_in + fan_out))
    return jax.random.uniform(key, (fan_in, fan_out), jnp.float32, -bound, bound)


def random_bn_stats(key, c):
    k1, k2, k3, k4 = jax.random.split(key, 4)
    return dict(
        gamma=jax.random.uniform(k1, (c,), jnp.float32, 0.5, 1.5),
        beta=0.1 * jax.random.normal(k2, (c,), jnp.float32),
        mean=0.1 * jax.random.normal(k3, (c,), jnp.float32),
        var=jax.random.uniform(k4, (c,), jnp.float32, 0.5, 1.5),
    )


def init_raw_params(key, num_node_feat, hidden_channels, time_channels):
    f, h, tc = num_node_feat, hidden_channels, time_channels
    k = jax.random.split(key, 8)
    return dict(
        wt=xavier_uniform(k[0], tc, f), bt=jnp.zeros((f,), jnp.float32),
        w1=xavier_uniform(k[1], 2 * f, h), b1=jnp.zeros((h,), jnp.float32),
        w2=xavier_uniform(k[2], h, h), b2=jnp.zeros((h,), jnp.float32),
        w3=xavier_uniform(k[3], h, h), b3=jnp.zeros((h,), jnp.float32),
        bn_t=random_bn_stats(k[4], f),
        bn_1=random_bn_stats(k[5], h),
        bn_2=random_bn_stats(k[6], h),
        bn_3=random_bn_stats(k[7], h),
    )


def fold_params(raw, eps=1e-5):
    """Fold eval-mode BatchNorm into weights (bf16) and per-channel shifts (f32).

    Weights of layers 2/3 are stacked into one [2,H,H] buffer and the three
    folded shifts into one [3,H] buffer to cut kernel operand count."""
    bf16 = jnp.bfloat16

    def scale_shift(bn):
        sc = bn["gamma"] / jnp.sqrt(bn["var"] + eps)
        sh = bn["beta"] - bn["mean"] * sc
        return sc, sh

    sct, sht = scale_shift(raw["bn_t"])
    sc1, sh1 = scale_shift(raw["bn_1"])
    sc2, sh2 = scale_shift(raw["bn_2"])
    sc3, sh3 = scale_shift(raw["bn_3"])
    F = raw["wt"].shape[1]
    w1 = raw["w1"] * sc1[None, :]
    return dict(
        wt=(raw["wt"] * sct[None, :]).astype(bf16),
        bt=(raw["bt"] * sct + sht)[None, :],
        w1a=w1[:F].astype(bf16),
        w1b=w1[F:].astype(bf16),
        w23=jnp.stack([raw["w2"] * sc2[None, :],
                       raw["w3"] * sc3[None, :]]).astype(bf16),
        b123=jnp.stack([raw["b1"] * sc1 + sh1,
                        raw["b2"] * sc2 + sh2,
                        raw["b3"] * sc3 + sh3]),
    )


def build_batched_gcn_adj(edge_index, batch, n):
    """Per-graph dense Â = D^{-1/2}(A + remaining self loops)D^{-1/2}, shape [B, n, n].

    Assumes PyG-style batching (block-diagonal: every edge stays inside its graph)."""
    src, dst = edge_index[0], edge_index[1]
    g = src // n
    a = jnp.zeros((batch, n, n), jnp.float32).at[g, dst % n, src % n].add(1.0)
    diag = jnp.diagonal(a, axis1=1, axis2=2)                         # [B, n]
    a = a + jnp.eye(n, dtype=jnp.float32)[None] * (diag == 0.0).astype(jnp.float32)[:, :, None]
    deg = jnp.sum(a, axis=2)                                         # in-degree incl. self loop
    dinv = jnp.where(deg > 0.0, 1.0 / jnp.sqrt(deg), 0.0)
    return dinv[:, :, None] * a * dinv[:, None, :]


def build_packed_gcn_adj(edge_index, batch, n, graphs_per_step):
    """Block-diagonal Â super-blocks, shape [ceil(B/G), G*n, G*n], pre-cast to bf16.

    Built (and cast) once, hoisted out of the per-call forward path."""
    G = graphs_per_step
    S = -(-batch // G)                                                # ceil(B/G)
    adj = build_batched_gcn_adj(edge_index, batch, n)                 # [B, n, n]
    adj = jnp.pad(adj, ((0, S * G - batch), (0, 0), (0, 0)))          # pad graphs with zeros
    adj = adj.reshape(S, G, n, n)
    eye = jnp.eye(G, dtype=adj.dtype)[None, :, None, :, None]         # [1, G, 1, G, 1]
    packed = (adj[:, :, :, None, :] * eye).reshape(S, G * n, G * n)
    return packed.astype(jnp.bfloat16)


def gcn_norm_adj_full(edge_index, n_total):
    """Full dense Â over all nodes (reference only)."""
    src, dst = edge_index[0], edge_index[1]
    a = jnp.zeros((n_total, n_total), jnp.float32).at[dst, src].add(1.0)
    diag = jnp.diagonal(a)
    a = a + jnp.eye(n_total, dtype=jnp.float32) * (diag == 0.0).astype(jnp.float32)
    deg = jnp.sum(a, axis=1)
    dinv = jnp.where(deg > 0.0, 1.0 / jnp.sqrt(deg), 0.0)
    return dinv[:, None] * a * dinv[None, :]


# --------------------------------------------------------------------------- wrapper
def temporal_gcn_block(x, t, adj_packed, fp, num_nodes, graphs_per_step):
    """x: [B*n, F] f32, t: [B, TC] f32, adj_packed: [S, G*n, G*n] bf16 (pre-built)."""
    bf16, f32 = jnp.bfloat16, jnp.float32
    B = t.shape[0]
    n = num_nodes
    F = x.shape[1]
    H = fp["w1a"].shape[1]
    G = graphs_per_step
    S = adj_packed.shape[0]
    Nb = G * n
    B_pad = S * G

    # time-embedding path hoisted out of the kernel: one batched XLA matmul pair
    # (Linear+BN folded -> ReLU -> concat-part of W1), Dropout = identity (eval).
    te = jax.nn.relu(jnp.dot(t.astype(bf16), fp["wt"],
                             preferred_element_type=f32) + fp["bt"])          # [B, F]
    t_contrib = jnp.dot(te.astype(bf16), fp["w1b"],
                        preferred_element_type=f32)                           # [B, H]

    pad_rows = (B_pad - B) * n
    xp = jnp.pad(x.astype(bf16), ((0, pad_rows), (0, 0))).reshape(S, Nb, F)
    tcp = jnp.pad(jnp.repeat(t_contrib, n, axis=0),
                  ((0, pad_rows), (0, 0))).reshape(S, Nb, H)

    args = (xp, adj_packed, tcp, fp["w1a"], fp["w23"], fp["b123"])

    # advisory cost hint for the XLA scheduler
    flops = S * (2 * Nb * F * H + 2 * 2 * Nb * H * H + 3 * 2 * Nb * Nb * H)
    bytes_accessed = sum(int(a.size) * a.dtype.itemsize for a in args) + S * Nb * H * 4

    out = pl.pallas_call(
        temporal_gcn_kernel,
        out_shape=jax.ShapeDtypeStruct((S, Nb, H), jnp.float32),
        grid=(S,),
        in_specs=[
            pl.BlockSpec((None, Nb, F), lambda s: (s, 0, 0)),     # x      (per step)
            pl.BlockSpec((None, Nb, Nb), lambda s: (s, 0, 0)),    # Â      (per step)
            pl.BlockSpec((None, Nb, H), lambda s: (s, 0, 0)),     # te@W1b (per step)
            pl.BlockSpec(fp["w1a"].shape, lambda s: (0, 0)),      # grid-invariant
            pl.BlockSpec(fp["w23"].shape, lambda s: (0, 0, 0)),   # grid-invariant
            pl.BlockSpec(fp["b123"].shape, lambda s: (0, 0)),     # grid-invariant
        ],
        out_specs=pl.BlockSpec((None, Nb, H), lambda s: (s, 0, 0)),
        compiler_params=pltpu.CompilerParams(dimension_semantics=("parallel",)),
        cost_estimate=pl.CostEstimate(flops=int(flops), transcendentals=0,
                                      bytes_accessed=int(bytes_accessed)),
    )(*args)
    return out.reshape(B_pad * n, H)[: B * n]


# ------------------------------------------------------------------------- references
def bn_eval(h, bn, eps=1e-5):
    return (h - bn["mean"]) / jnp.sqrt(bn["var"] + eps) * bn["gamma"] + bn["beta"]


def reference_f32(x, t, edge_index, raw, num_nodes):
    """Module-faithful eval-mode forward in pure f32 JAX (unfolded BN, explicit concat)."""
    n_total = x.shape[0]
    adj = gcn_norm_adj_full(edge_index, n_total)
    t_rep = jnp.repeat(t, num_nodes, axis=0)
    te = jax.nn.relu(bn_eval(t_rep @ raw["wt"] + raw["bt"], raw["bn_t"]))
    xc = jnp.concatenate([x, te], axis=-1)
    h1 = jax.nn.relu(bn_eval(adj @ (xc @ raw["w1"]) + raw["b1"], raw["bn_1"]))
    h2 = jax.nn.relu(bn_eval(adj @ (h1 @ raw["w2"]) + raw["b2"], raw["bn_2"]))
    h3 = jax.nn.relu(bn_eval(adj @ (h2 @ raw["w3"]) + raw["b3"], raw["bn_3"]))
    return h3


def reference_bf16(x, t, adj_b, fp, num_nodes):
    """bf16-matched reference (same folded params and casts as the kernel)."""
    bf16, f32 = jnp.bfloat16, jnp.float32
    B = adj_b.shape[0]
    n = num_nodes
    xb = x.reshape(B, n, -1).astype(bf16)
    adj = adj_b.astype(bf16)
    te = jax.nn.relu(jnp.dot(t.astype(bf16), fp["wt"], preferred_element_type=f32) + fp["bt"])
    tco = jnp.dot(te.astype(bf16), fp["w1b"], preferred_element_type=f32)
    m1 = jnp.einsum("bnf,fh->bnh", xb, fp["w1a"], preferred_element_type=f32) + tco[:, None, :]
    h1 = jax.nn.relu(jnp.einsum("bij,bjh->bih", adj, m1.astype(bf16),
                                preferred_element_type=f32) + fp["b123"][0])
    m2 = jnp.einsum("bnh,hk->bnk", h1.astype(bf16), fp["w23"][0], preferred_element_type=f32)
    h2 = jax.nn.relu(jnp.einsum("bij,bjh->bih", adj, m2.astype(bf16),
                                preferred_element_type=f32) + fp["b123"][1])
    m3 = jnp.einsum("bnh,hk->bnk", h2.astype(bf16), fp["w23"][1], preferred_element_type=f32)
    h3 = jax.nn.relu(jnp.einsum("bij,bjh->bih", adj, m3.astype(bf16),
                                preferred_element_type=f32) + fp["b123"][2])
    return h3.reshape(B * n, -1)


# ------------------------------------------------------------------------------ main
if __name__ == "__main__":
    key = jax.random.PRNGKey(0)
    batch = 2
    num_node_feat = 16      # nodes per graph == node-feature dim (module convention)
    hidden_channels = 32    # small demo size; prefer multiples of 128 for real workloads
    time_channels = 8
    n_total = batch * num_node_feat

    k_x, k_t, k_p = jax.random.split(key, 3)
    x = jax.random.normal(k_x, (n_total, num_node_feat), jnp.float32)
    t = jax.random.normal(k_t, (batch, time_channels), jnp.float32)

    # deterministic block-diagonal bidirectional ring graph (PyG-style batching)
    nodes = jnp.arange(num_node_feat)
    src0 = jnp.concatenate([nodes, (nodes + 1) % num_node_feat])
    dst0 = jnp.concatenate([(nodes + 1) % num_node_feat, nodes])
    edge_index = jnp.concatenate(
        [jnp.stack([src0 + b * num_node_feat, dst0 + b * num_node_feat]) for b in range(batch)],
        axis=1)                                                    # [2, E]

    raw = init_raw_params(k_p, num_node_feat, hidden_channels, time_channels)
    fp = fold_params(raw)                                          # one-time BN fold + bf16 cast

    # Pack all graphs into a single grid step at these tiny sizes (G*n = 32 rows).
    # For real workloads: pick G so G*n is a multiple of 256 (v6e/v7x) / 128 (v5e),
    # keep >= 2 balanced parallel steps on v7x (2 TCs), and cap the super-block
    # against v7x's 64 MiB VMEM (bump vmem_limit_bytes if enlarging).
    graphs_per_step = batch
    adj_packed = build_packed_gcn_adj(edge_index, batch, num_node_feat, graphs_per_step)

    out = temporal_gcn_block(x, t, adj_packed, fp, num_node_feat, graphs_per_step)
    out = jax.block_until_ready(out)

    adj_b = build_batched_gcn_adj(edge_index, batch, num_node_feat)
    ref_bf = reference_bf16(x, t, adj_b, fp, num_node_feat)
    ref_32 = reference_f32(x, t, edge_index, raw, num_node_feat)

    assert out.shape == (n_total, hidden_channels)
    assert jnp.allclose(out, ref_bf, atol=2e-3, rtol=2e-3), \
        "Pallas output mismatch vs bf16-matched reference"
    assert jnp.allclose(out, ref_32, atol=5e-2, rtol=5e-2), \
        "Pallas output mismatch vs f32 module reference"

    print("KERNEL_OK")
</pallas_src>

<mosaic_0001>
module attributes {stable_mosaic.version = 11 : i64} {
  func.func @temporal_gcn_kernel(%arg0: i32, %arg1: memref<1x32x16xbf16, #tpu.memory_space<vmem>>, %arg2: memref<1x32x32xbf16, #tpu.memory_space<vmem>>, %arg3: memref<1x32x32xf32, #tpu.memory_space<vmem>>, %arg4: memref<16x32xbf16, #tpu.memory_space<vmem>>, %arg5: memref<2x32x32xbf16, #tpu.memory_space<vmem>>, %arg6: memref<3x32xf32, #tpu.memory_space<vmem>>, %arg7: memref<1x32x32xf32, #tpu.memory_space<vmem>>) attributes {dimension_semantics = [#tpu.dimension_semantics<parallel>], iteration_bounds = array<i64: 1>, scalar_prefetch = 0 : i64, scratch_operands = 0 : i64, tpu.core_type = #tpu.core_type<tc>, window_params = [{transform_indices = @transform_0, window_bounds = array<i64: 1, 32, 16>}, {transform_indices = @transform_1, window_bounds = array<i64: 1, 32, 32>}, {transform_indices = @transform_2, window_bounds = array<i64: 1, 32, 32>}, {pipeline_mode = #tpu.pipeline_mode<synchronous>, transform_indices = @transform_3, window_bounds = array<i64: 16, 32>}, {pipeline_mode = #tpu.pipeline_mode<synchronous>, transform_indices = @transform_4, window_bounds = array<i64: 2, 32, 32>}, {pipeline_mode = #tpu.pipeline_mode<synchronous>, transform_indices = @transform_5, window_bounds = array<i64: 3, 32>}, {transform_indices = @transform_6, window_bounds = array<i64: 1, 32, 32>}]} {
    %c0 = arith.constant 0 : index
    %c0_0 = arith.constant 0 : index
    %c0_1 = arith.constant 0 : index
    %0 = vector.load %arg2[%c0, %c0_0, %c0_1] : memref<1x32x32xbf16, #tpu.memory_space<vmem>>, vector<1x32x32xbf16>
    %1 = vector.shape_cast %0 : vector<1x32x32xbf16> to vector<32x32xbf16>
    %c0_2 = arith.constant 0 : index
    %c0_3 = arith.constant 0 : index
    %c0_4 = arith.constant 0 : index
    %2 = vector.load %arg1[%c0_2, %c0_3, %c0_4] : memref<1x32x16xbf16, #tpu.memory_space<vmem>>, vector<1x32x16xbf16>
    %3 = vector.shape_cast %2 : vector<1x32x16xbf16> to vector<32x16xbf16>
    %c0_5 = arith.constant 0 : index
    %c0_6 = arith.constant 0 : index
    %4 = vector.load %arg4[%c0_5, %c0_6] : memref<16x32xbf16, #tpu.memory_space<vmem>>, vector<16x32xbf16>
    %cst = arith.constant dense<0.000000e+00> : vector<32x32xf32>
    %5 = tpu.matmul %3, %4, %cst {dimension_numbers = #tpu.dot_dimension_numbers<[1], [0], [0], [1], [0, 0, 1, 1], [], []>} : vector<32x16xbf16>, vector<16x32xbf16>, vector<32x32xf32> -> vector<32x32xf32>
    %c0_7 = arith.constant 0 : index
    %c0_8 = arith.constant 0 : index
    %c0_9 = arith.constant 0 : index
    %6 = vector.load %arg3[%c0_7, %c0_8, %c0_9] : memref<1x32x32xf32, #tpu.memory_space<vmem>>, vector<1x32x32xf32>
    %7 = vector.shape_cast %6 : vector<1x32x32xf32> to vector<32x32xf32>
    %8 = arith.addf %5, %7 : vector<32x32xf32>
    %9 = arith.truncf %8 : vector<32x32xf32> to vector<32x32xbf16>
    %cst_10 = arith.constant dense<0.000000e+00> : vector<32x32xf32>
    %10 = tpu.matmul %1, %9, %cst_10 {dimension_numbers = #tpu.dot_dimension_numbers<[1], [0], [0], [1], [0, 0, 1, 1], [], []>} : vector<32x32xbf16>, vector<32x32xbf16>, vector<32x32xf32> -> vector<32x32xf32>
    %c0_11 = arith.constant 0 : index
    %c0_12 = arith.constant 0 : index
    %11 = vector.load %arg6[%c0_11, %c0_12] : memref<3x32xf32, #tpu.memory_space<vmem>>, vector<1x32xf32>
    %12 = vector.broadcast %11 : vector<1x32xf32> to vector<32x32xf32>
    %13 = arith.addf %10, %12 : vector<32x32xf32>
    %cst_13 = arith.constant 0.000000e+00 : f32
    %14 = vector.broadcast %cst_13 : f32 to vector<32x32xf32>
    %15 = arith.maximumf %13, %14 : vector<32x32xf32>
    %16 = arith.truncf %15 : vector<32x32xf32> to vector<32x32xbf16>
    %c0_14 = arith.constant 0 : index
    %c0_15 = arith.constant 0 : index
    %c0_16 = arith.constant 0 : index
    %17 = vector.load %arg5[%c0_14, %c0_15, %c0_16] : memref<2x32x32xbf16, #tpu.memory_space<vmem>>, vector<1x32x32xbf16>
    %18 = vector.shape_cast %17 : vector<1x32x32xbf16> to vector<32x32xbf16>
    %cst_17 = arith.constant dense<0.000000e+00> : vector<32x32xf32>
    %19 = tpu.matmul %16, %18, %cst_17 {dimension_numbers = #tpu.dot_dimension_numbers<[1], [0], [0], [1], [0, 0, 1, 1], [], []>} : vector<32x32xbf16>, vector<32x32xbf16>, vector<32x32xf32> -> vector<32x32xf32>
    %20 = arith.truncf %19 : vector<32x32xf32> to vector<32x32xbf16>
    %cst_18 = arith.constant dense<0.000000e+00> : vector<32x32xf32>
    %21 = tpu.matmul %1, %20, %cst_18 {dimension_numbers = #tpu.dot_dimension_numbers<[1], [0], [0], [1], [0, 0, 1, 1], [], []>} : vector<32x32xbf16>, vector<32x32xbf16>, vector<32x32xf32> -> vector<32x32xf32>
    %c1 = arith.constant 1 : index
    %c0_19 = arith.constant 0 : index
    %22 = vector.load %arg6[%c1, %c0_19] : memref<3x32xf32, #tpu.memory_space<vmem>>, vector<1x32xf32>
    %23 = vector.broadcast %22 : vector<1x32xf32> to vector<32x32xf32>
    %24 = arith.addf %21, %23 : vector<32x32xf32>
    %cst_20 = arith.constant 0.000000e+00 : f32
    %25 = vector.broadcast %cst_20 : f32 to vector<32x32xf32>
    %26 = arith.maximumf %24, %25 : vector<32x32xf32>
    %27 = arith.truncf %26 : vector<32x32xf32> to vector<32x32xbf16>
    %c1_21 = arith.constant 1 : index
    %c0_22 = arith.constant 0 : index
    %c0_23 = arith.constant 0 : index
    %28 = vector.load %arg5[%c1_21, %c0_22, %c0_23] : memref<2x32x32xbf16, #tpu.memory_space<vmem>>, vector<1x32x32xbf16>
    %29 = vector.shape_cast %28 : vector<1x32x32xbf16> to vector<32x32xbf16>
    %cst_24 = arith.constant dense<0.000000e+00> : vector<32x32xf32>
    %30 = tpu.matmul %27, %29, %cst_24 {dimension_numbers = #tpu.dot_dimension_numbers<[1], [0], [0], [1], [0, 0, 1, 1], [], []>} : vector<32x32xbf16>, vector<32x32xbf16>, vector<32x32xf32> -> vector<32x32xf32>
    %31 = arith.truncf %30 : vector<32x32xf32> to vector<32x32xbf16>
    %cst_25 = arith.constant dense<0.000000e+00> : vector<32x32xf32>
    %32 = tpu.matmul %1, %31, %cst_25 {dimension_numbers = #tpu.dot_dimension_numbers<[1], [0], [0], [1], [0, 0, 1, 1], [], []>} : vector<32x32xbf16>, vector<32x32xbf16>, vector<32x32xf32> -> vector<32x32xf32>
    %c2 = arith.constant 2 : index
    %c0_26 = arith.constant 0 : index
    %33 = vector.load %arg6[%c2, %c0_26] : memref<3x32xf32, #tpu.memory_space<vmem>>, vector<1x32xf32>
    %34 = vector.broadcast %33 : vector<1x32xf32> to vector<32x32xf32>
    %35 = arith.addf %32, %34 : vector<32x32xf32>
    %cst_27 = arith.constant 0.000000e+00 : f32
    %36 = vector.broadcast %cst_27 : f32 to vector<32x32xf32>
    %37 = arith.maximumf %35, %36 : vector<32x32xf32>
    %c0_28 = arith.constant 0 : index
    %c0_29 = arith.constant 0 : index
    %c0_30 = arith.constant 0 : index
    %38 = vector.load %arg7[%c0_28, %c0_29, %c0_30] : memref<1x32x32xf32, #tpu.memory_space<vmem>>, vector<1x32x32xf32>
    %39 = vector.shape_cast %38 : vector<1x32x32xf32> to vector<32x32xf32>
    %40 = vector.shape_cast %37 : vector<32x32xf32> to vector<1x32x32xf32>
    tpu.vector_store %arg7[%c0_28, %c0_29, %c0_30], %40 {strides = array<i32>} : memref<1x32x32xf32, #tpu.memory_space<vmem>>, vector<1x32x32xf32>,
    return
  }
  func.func @transform_0(%arg0: i32) -> (i32, i32, i32) {
    %c0_i32 = arith.constant 0 : i32
    %c0_i32_0 = arith.constant 0 : i32
    %c0_i32_1 = arith.constant 0 : i32
    return %arg0, %c0_i32, %c0_i32_0 : i32, i32, i32
  }
  func.func @transform_1(%arg0: i32) -> (i32, i32, i32) {
    %c0_i32 = arith.constant 0 : i32
    %c0_i32_0 = arith.constant 0 : i32
    %c0_i32_1 = arith.constant 0 : i32
    return %arg0, %c0_i32, %c0_i32_0 : i32, i32, i32
  }
  func.func @transform_2(%arg0: i32) -> (i32, i32, i32) {
    %c0_i32 = arith.constant 0 : i32
    %c0_i32_0 = arith.constant 0 : i32
    %c0_i32_1 = arith.constant 0 : i32
    return %arg0, %c0_i32, %c0_i32_0 : i32, i32, i32
  }
  func.func @transform_3(%arg0: i32) -> (i32, i32) {
    %c0_i32 = arith.constant 0 : i32
    %c0_i32_0 = arith.constant 0 : i32
    %c0_i32_1 = arith.constant 0 : i32
    return %c0_i32, %c0_i32_0 : i32, i32
  }
  func.func @transform_4(%arg0: i32) -> (i32, i32, i32) {
    %c0_i32 = arith.constant 0 : i32
    %c0_i32_0 = arith.constant 0 : i32
    %c0_i32_1 = arith.constant 0 : i32
    %c0_i32_2 = arith.constant 0 : i32
    return %c0_i32, %c0_i32_0, %c0_i32_1 : i32, i32, i32
  }
  func.func @transform_5(%arg0: i32) -> (i32, i32) {
    %c0_i32 = arith.constant 0 : i32
    %c0_i32_0 = arith.constant 0 : i32
    %c0_i32_1 = arith.constant 0 : i32
    return %c0_i32, %c0_i32_0 : i32, i32
  }
  func.func @transform_6(%arg0: i32) -> (i32, i32, i32) {
    %c0_i32 = arith.constant 0 : i32
    %c0_i32_0 = arith.constant 0 : i32
    %c0_i32_1 = arith.constant 0 : i32
    return %arg0, %c0_i32, %c0_i32_0 : i32, i32, i32
  }
}

</mosaic_0001>

<llo_original>
// kernel: tpu_custom_call.1
$region0: #{tpu_custom_call.1}
  #allocation0 [shape = 'u32[]', space=smem, size = 0x4, offset = 0x4, fixed_abs, tag = 'smem constant byte address 0x4 - core index']
  #allocation1 [shape = 'u32[144,128]{1,0:T(1,128)}', space=vmem, size = 0x12000, scoped, tag = 'internal scratch']
  %s0 = inlined_call_operand.vmem [shape: bf16[1,32,16], index: 0, kind: input, shape index: {}]
  %s1 = inlined_call_operand.vmem [shape: bf16[1,32,32], index: 1, kind: input, shape index: {}]
  %s2 = inlined_call_operand.hbm [shape: f32[1,32,32], index: 2, kind: input, shape index: {}]
  %s3 = inlined_call_operand.vmem [shape: bf16[16,32], index: 3, kind: input, shape index: {}]
  %s4 = inlined_call_operand.hbm [shape: bf16[2,32,32], index: 4, kind: input, shape index: {}]
  %s5 = inlined_call_operand.vmem [shape: f32[3,32], index: 5, kind: input, shape index: {}]
  %s6 = inlined_call_operand.hbm [shape: f32[1,32,32], index: 6, kind: output, shape index: {}]
  %s7 = sld [smem:[#allocation0]]
  $region42: #{tpu_custom_call.1} parent=0
    _
  %s9 = ssub.s32 1, %s7
  %s10 = scalar_select 0, %s9, %s7
  $region1: #{tpu_custom_call.1} parent=0
    #allocation2 [shape = 'u8[16384]{0}', space=vmem, size = 0x4000, scoped, tag = 'input window, operand 2, single buffered']
    #allocation3 [shape = 's32[1]{0}', space=sflag, size = 0x4, scoped, tag = 'scoped memory for tpu_custom_call.1']
    #allocation4 [shape = 's32[1]{0}', space=sflag, size = 0x4, scoped, tag = 'scoped memory for tpu_custom_call.1']
    #allocation5 [shape = 'u8[16384]{0}', space=vmem, size = 0x4000, scoped, tag = 'input window, operand 4, single buffered']
    #allocation6 [shape = 's32[1]{0}', space=sflag, size = 0x4, scoped, tag = 'scoped memory for tpu_custom_call.1']
    #allocation7 [shape = 'u8[16384]{0}', space=vmem, size = 0x4000, scoped, tag = 'output window, operand 0, single buffered']
    %11 = vsyncpa [#allocation3], 0
    %12 = vsyncpa [#allocation6], 0
    %13 = vsyncpa [#allocation4], 0
    // Predicated region
    $region2: #{tpu_custom_call.1} parent=1 // pred_check
      _
    $region3: #{tpu_custom_call.1} parent=1 // pred_check_branch
      %15 = sbr.rel (0) target = $region5
    $region4: #{tpu_custom_call.1} parent=1 // pred_region
      _
    $region5: #{tpu_custom_call.1} parent=1 // pred_fallthru
      _
    // Predicated region
    $region6: #{tpu_custom_call.1} parent=1 // pred_check
      _
    $region7: #{tpu_custom_call.1} parent=1 // pred_check_branch
      %17 = sbr.rel (0) target = $region9
    $region8: #{tpu_custom_call.1} parent=1 // pred_region
      _
    $region9: #{tpu_custom_call.1} parent=1 // pred_fallthru
      _
    // Predicated region
    $region10: #{tpu_custom_call.1} parent=1 // pred_check
      _
    $region11: #{tpu_custom_call.1} parent=1 // pred_check_branch
      %19 = sbr.rel (0) target = $region13
    $region12: #{tpu_custom_call.1} parent=1 // pred_region
      %s21 = ssub.s32 512, 512
      %22 = vsyncadd [#allocation3], %s21
      %s23 = sshll.u32 [#allocation2], 4
      %s24 = int_to_ptr.vmem [resolvable:$true] %s23
      %29 = dma.hbm_to_vmem [thread:$0]  %s2, 512, %s24, [#allocation3], 128, 128, 8
    $region13: #{tpu_custom_call.1} parent=1 // pred_fallthru
      _
    // Predicated region
    $region14: #{tpu_custom_call.1} parent=1 // pred_check
      _
    $region15: #{tpu_custom_call.1} parent=1 // pred_check_branch
      %31 = sbr.rel (0) target = $region17
    $region16: #{tpu_custom_call.1} parent=1 // pred_region
      _
    $region17: #{tpu_custom_call.1} parent=1 // pred_fallthru
      _
    // Predicated region
    $region18: #{tpu_custom_call.1} parent=1 // pred_check
      _
    $region19: #{tpu_custom_call.1} parent=1 // pred_check_branch
      %33 = sbr.rel (0) target = $region21
    $region20: #{tpu_custom_call.1} parent=1 // pred_region
      %s35 = ssub.s32 512, 512
      %36 = vsyncadd [#allocation6], %s35
      %s37 = sshll.u32 [#allocation5], 4
      %s38 = int_to_ptr.vmem [resolvable:$true] %s37
      %43 = dma.hbm_to_vmem [thread:$0]  %s4, 512, %s38, [#allocation6], 64, 64, 4
    $region21: #{tpu_custom_call.1} parent=1 // pred_fallthru
      _
    // Predicated region
    $region22: #{tpu_custom_call.1} parent=1 // pred_check
      _
    $region23: #{tpu_custom_call.1} parent=1 // pred_check_branch
      %45 = sbr.rel (0) target = $region25
    $region24: #{tpu_custom_call.1} parent=1 // pred_region
      _
    $region25: #{tpu_custom_call.1} parent=1 // pred_fallthru
      _
    // Predicated region
    $region26: #{tpu_custom_call.1} parent=1 // pred_check
      _
    $region27: #{tpu_custom_call.1} parent=1 // pred_check_branch
      %47 = sbr.rel (0) target = $region29
    $region28: #{tpu_custom_call.1} parent=1 // pred_region
      %48 = dma.done [#allocation3], 512
    $region29: #{tpu_custom_call.1} parent=1 // pred_fallthru
      _
    // Predicated region
    $region30: #{tpu_custom_call.1} parent=1 // pred_check
      _
    $region31: #{tpu_custom_call.1} parent=1 // pred_check_branch
      %50 = sbr.rel (0) target = $region33
    $region32: #{tpu_custom_call.1} parent=1 // pred_region
      %51 = dma.done [#allocation6], 512
    $region33: #{tpu_custom_call.1} parent=1 // pred_fallthru
      _
    %v53 = vld [vmem:[%s1] sm:$0xf]
    %v54 = vld [vmem:[%s1 + $0x4] sm:$0xf]
    %v55 = vld [vmem:[%s1 + $0x8] sm:$0xf]
    %v56 = vld [vmem:[%s1 + $0xc] sm:$0xf]
    %v57 = vld [vmem:[%s0] sm:$0xf]
    %v58 = vld [vmem:[%s0 + $0x4] sm:$0xf]
    %v59 = vld [vmem:[%s0 + $0x8] sm:$0xf]
    %v60 = vld [vmem:[%s0 + $0xc] sm:$0xf]
    %v61 = vld [vmem:[%s3] sm:$0xf]
    %v62 = vld [vmem:[%s3 + $0x4] sm:$0xf]
    %v63 = vld [vmem:[#allocation2] sm:$0xff]
    %v64 = vld [vmem:[#allocation2 + $0x8] sm:$0xff]
    %v65 = vld [vmem:[#allocation2 + $0x10] sm:$0xff]
    %v66 = vld [vmem:[#allocation2 + $0x18] sm:$0xff]
    %v71 = vunpack.c.l.b16 %v57
    %v72 = vunpack.c.l.b16 %v58
    %v73 = vunpack.c.l.b16 %v59
    %v74 = vunpack.c.l.b16 %v60
    %v75 = vpack.c.b16 %v72, %v71
    %v76 = vpack.c.b16 %v74, %v73
    %v79 = vunpack.c.l.b16 %v61
    %v80 = vunpack.c.l.b16 %v62
    %v81 = vpack.c.b16 %v80, %v79
    %vm83 = vcmask 130048
    %v85 = vsel %vm83, %v75, 0
    %v88 = vsel %vm83, %v76, 0
    %90 = vmatprep.subr.bf16.mxu0 0
    %91 = vmatpush1.bf16.msra.mxu0 0
    %92 = vmatprep.subr.bf16.mxu0 0
    %93 = vmatpush1.bf16.msra.mxu0 0
    %94 = vmatprep.subr.bf16.mxu0 0
    %95 = vmatpush1.bf16.msra.mxu0 0
    %96 = vmatprep.subr.bf16.mxu0 0
    %97 = vmatpush1.bf16.msra.mxu0 0
    %98 = vmatprep.subr.bf16.mxu0 0
    %99 = vmatpush1.bf16.msra.mxu0 0
    %100 = vmatprep.subr.bf16.mxu0 0
    %101 = vmatpush1.bf16.msra.mxu0 0
    %102 = vmatprep.subr.bf16.mxu0 0
    %103 = vmatpush1.bf16.msra.mxu0 0
    %104 = vmatprep.subr.bf16.mxu0 0
    %105 = vmatpush1.bf16.msra.mxu0 %v81
    %106 = vmatprep.subr.bf16.mxu0 0
    %107 = vmatpush2.bf16.msra.mxu0 0
    %108 = vmatprep.subr.bf16.mxu0 0
    %109 = vmatpush2.bf16.msra.mxu0 0
    %110 = vmatprep.subr.bf16.mxu0 0
    %111 = vmatpush2.bf16.msra.mxu0 0
    %112 = vmatprep.subr.bf16.mxu0 0
    %113 = vmatpush2.bf16.msra.mxu0 0
    %114 = vmatprep.subr.bf16.mxu0 0
    %115 = vmatpush2.bf16.msra.mxu0 0
    %116 = vmatprep.subr.bf16.mxu0 0
    %117 = vmatpush2.bf16.msra.mxu0 0
    %118 = vmatprep.subr.bf16.mxu0 0
    %119 = vmatpush2.bf16.msra.mxu0 0
    %120 = vmatprep.subr.bf16.mxu0 0
    %121 = vmatpush2.bf16.msra.mxu0 0
    %122 = vmatprep.mubr.bf16.mxu0 0
    %123 = vmatmul.mubr.bf16.gmra.mxu0 %v85
    %v124 = vpop.f32.mrf.mxu0
    %v125 = vadd.f32 %v63, %v124
    %v126 = vpop.f32.mrf.mxu0
    %v127 = vpop.f32.mrf.mxu0
    %v128 = vadd.f32 %v64, %v127
    %v129 = vpop.f32.mrf.mxu0
    %130 = vmatprep.mubr.bf16.mxu0 0
    %131 = vmatmul.mubr.bf16.gmra.mxu0 %v88
    %v132 = vpop.f32.mrf.mxu0
    %v133 = vadd.f32 %v65, %v132
    %v134 = vpop.f32.mrf.mxu0
    %v135 = vpop.f32.mrf.mxu0
    %v136 = vadd.f32 %v66, %v135
    %v137 = vpop.f32.mrf.mxu0
    %138 = vdwg.mxu0
    %v139 = vpack.c.bf16 %v128, %v125
    %v140 = vpack.c.bf16 %v136, %v133
    %v141 = vld [vmem:[%s5] sm:$0x1]
    %v142 = vlaneseq
    %v143 = vshrl.u32 %v142, 7
    %v144 = vsub.s32 0, %v143
    %v145 = vrot.slane %v141, %v144
    %v150 = vunpack.c.l.b16 %v53
    %v151 = vunpack.c.l.b16 %v54
    %v152 = vunpack.c.l.b16 %v55
    %v153 = vunpack.c.l.b16 %v56
    %v154 = vpack.c.b16 %v151, %v150
    %v155 = vpack.c.b16 %v153, %v152
    %vm156 = vcmask 261120
    %v158 = vsel %vm156, %v154, 0
    %v161 = vsel %vm156, %v155, 0
    %163 = vmatprep.subr.bf16.mxu0 0
    %164 = vmatpush1.bf16.msra.mxu0 0
    %165 = vmatprep.subr.bf16.mxu0 0
    %166 = vmatpush1.bf16.msra.mxu0 0
    %167 = vmatprep.subr.bf16.mxu0 0
    %168 = vmatpush1.bf16.msra.mxu0 0
    %169 = vmatprep.subr.bf16.mxu0 0
    %170 = vmatpush1.bf16.msra.mxu0 0
    %171 = vmatprep.subr.bf16.mxu0 0
    %172 = vmatpush1.bf16.msra.mxu0 0
    %173 = vmatprep.subr.bf16.mxu0 0
    %174 = vmatpush1.bf16.msra.mxu0 0
    %175 = vmatprep.subr.bf16.mxu0 0
    %176 = vmatpush1.bf16.msra.mxu0 %v140
    %177 = vmatprep.subr.bf16.mxu0 0
    %178 = vmatpush1.bf16.msra.mxu0 %v139
    %179 = vmatprep.subr.bf16.mxu0 0
    %180 = vmatpush2.bf16.msra.mxu0 0
    %181 = vmatprep.subr.bf16.mxu0 0
    %182 = vmatpush2.bf16.msra.mxu0 0
    %183 = vmatprep.subr.bf16.mxu0 0
    %184 = vmatpush2.bf16.msra.mxu0 0
    %185 = vmatprep.subr.bf16.mxu0 0
    %186 = vmatpush2.bf16.msra.mxu0 0
    %187 = vmatprep.subr.bf16.mxu0 0
    %188 = vmatpush2.bf16.msra.mxu0 0
    %189 = vmatprep.subr.bf16.mxu0 0
    %190 = vmatpush2.bf16.msra.mxu0 0
    %191 = vmatprep.subr.bf16.mxu0 0
    %192 = vmatpush2.bf16.msra.mxu0 0
    %193 = vmatprep.subr.bf16.mxu0 0
    %194 = vmatpush2.bf16.msra.mxu0 0
    %195 = vmatprep.mubr.bf16.mxu0 0
    %196 = vmatmul.mubr.bf16.gmra.mxu0 %v158
    %v197 = vpop.f32.mrf.mxu0
    %v198 = vadd.f32 %v145, %v197
    %v199 = vpop.f32.mrf.mxu0
    %v200 = vpop.f32.mrf.mxu0
    %v201 = vadd.f32 %v145, %v200
    %v202 = vpop.f32.mrf.mxu0
    %203 = vmatprep.mubr.bf16.mxu0 0
    %204 = vmatmul.mubr.bf16.gmra.mxu0 %v161
    %v205 = vpop.f32.mrf.mxu0
    %v206 = vadd.f32 %v145, %v205
    %v207 = vpop.f32.mrf.mxu0
    %v208 = vpop.f32.mrf.mxu0
    %v209 = vadd.f32 %v145, %v208
    %v210 = vpop.f32.mrf.mxu0
    %211 = vdwg.mxu0
    %v212 = vmax.f32 %v198, 0.0
    %v213 = vmax.f32 %v201, 0.0
    %v214 = vmax.f32 %v206, 0.0
    %v215 = vmax.f32 %v209, 0.0
    %v216 = vpack.c.bf16 %v213, %v212
    %v217 = vpack.c.bf16 %v215, %v214
    %v218 = vld [vmem:[#allocation5] sm:$0xf]
    %v219 = vld [vmem:[#allocation5 + $0x4] sm:$0xf]
    %v220 = vld [vmem:[#allocation5 + $0x8] sm:$0xf]
    %v221 = vld [vmem:[#allocation5 + $0xc] sm:$0xf]
    %v226 = vunpack.c.l.b16 %v218
    %v227 = vunpack.c.l.b16 %v219
    %v228 = vunpack.c.l.b16 %v220
    %v229 = vunpack.c.l.b16 %v221
    %v230 = vpack.c.b16 %v227, %v226
    %v231 = vpack.c.b16 %v229, %v228
    %v235 = vsel %vm156, %v216, 0
    %v238 = vsel %vm156, %v217, 0
    %240 = vmatprep.subr.bf16.mxu0 0
    %241 = vmatpush1.bf16.msra.mxu0 0
    %242 = vmatprep.subr.bf16.mxu0 0
    %243 = vmatpush1.bf16.msra.mxu0 0
    %244 = vmatprep.subr.bf16.mxu0 0
    %245 = vmatpush1.bf16.msra.mxu0 0
    %246 = vmatprep.subr.bf16.mxu0 0
    %247 = vmatpush1.bf16.msra.mxu0 0
    %248 = vmatprep.subr.bf16.mxu0 0
    %249 = vmatpush1.bf16.msra.mxu0 0
    %250 = vmatprep.subr.bf16.mxu0 0
    %251 = vmatpush1.bf16.msra.mxu0 0
    %252 = vmatprep.subr.bf16.mxu0 0
    %253 = vmatpush1.bf16.msra.mxu0 %v231
    %254 = vmatprep.subr.bf16.mxu0 0
    %255 = vmatpush1.bf16.msra.mxu0 %v230
    %256 = vmatprep.subr.bf16.mxu0 0
    %257 = vmatpush2.bf16.msra.mxu0 0
    %258 = vmatprep.subr.bf16.mxu0 0
    %259 = vmatpush2.bf16.msra.mxu0 0
    %260 = vmatprep.subr.bf16.mxu0 0
    %261 = vmatpush2.bf16.msra.mxu0 0
    %262 = vmatprep.subr.bf16.mxu0 0
    %263 = vmatpush2.bf16.msra.mxu0 0
    %264 = vmatprep.subr.bf16.mxu0 0
    %265 = vmatpush2.bf16.msra.mxu0 0
    %266 = vmatprep.subr.bf16.mxu0 0
    %267 = vmatpush2.bf16.msra.mxu0 0
    %268 = vmatprep.subr.bf16.mxu0 0
    %269 = vmatpush2.bf16.msra.mxu0 0
    %270 = vmatprep.subr.bf16.mxu0 0
    %271 = vmatpush2.bf16.msra.mxu0 0
    %272 = vmatprep.mubr.bf16.mxu0 0
    %273 = vmatmul.mubr.bf16.gmra.mxu0 %v235
    %v274 = vpop.f32.mrf.mxu0
    %v275 = vadd.f32 0.0, %v274
    %v276 = vpop.f32.mrf.mxu0
    %v277 = vpop.f32.mrf.mxu0
    %v278 = vadd.f32 0.0, %v277
    %v279 = vpop.f32.mrf.mxu0
    %280 = vmatprep.mubr.bf16.mxu0 0
    %281 = vmatmul.mubr.bf16.gmra.mxu0 %v238
    %v282 = vpop.f32.mrf.mxu0
    %v283 = vadd.f32 0.0, %v282
    %v284 = vpop.f32.mrf.mxu0
    %v285 = vpop.f32.mrf.mxu0
    %v286 = vadd.f32 0.0, %v285
    %v287 = vpop.f32.mrf.mxu0
    %288 = vdwg.mxu0
    %v289 = vpack.c.bf16 %v278, %v275
    %v290 = vpack.c.bf16 %v286, %v283
    %v291 = vld [vmem:[%s5 + $0x1] sm:$0x1]
    %v292 = vlaneseq
    %v293 = vshrl.u32 %v292, 7
    %v294 = vsub.s32 0, %v293
    %v295 = vrot.slane %v291, %v294
    %296 = vmatprep.subr.bf16.mxu0 0
    %297 = vmatpush1.bf16.msra.mxu0 0
    %298 = vmatprep.subr.bf16.mxu0 0
    %299 = vmatpush1.bf16.msra.mxu0 0
    %300 = vmatprep.subr.bf16.mxu0 0
    %301 = vmatpush1.bf16.msra.mxu0 0
    %302 = vmatprep.subr.bf16.mxu0 0
    %303 = vmatpush1.bf16.msra.mxu0 0
    %304 = vmatprep.subr.bf16.mxu0 0
    %305 = vmatpush1.bf16.msra.mxu0 0
    %306 = vmatprep.subr.bf16.mxu0 0
    %307 = vmatpush1.bf16.msra.mxu0 0
    %308 = vmatprep.subr.bf16.mxu0 0
    %309 = vmatpush1.bf16.msra.mxu0 %v290
    %310 = vmatprep.subr.bf16.mxu0 0
    %311 = vmatpush1.bf16.msra.mxu0 %v289
    %312 = vmatprep.subr.bf16.mxu0 0
    %313 = vmatpush2.bf16.msra.mxu0 0
    %314 = vmatprep.subr.bf16.mxu0 0
    %315 = vmatpush2.bf16.msra.mxu0 0
    %316 = vmatprep.subr.bf16.mxu0 0
    %317 = vmatpush2.bf16.msra.mxu0 0
    %318 = vmatprep.subr.bf16.mxu0 0
    %319 = vmatpush2.bf16.msra.mxu0 0
    %320 = vmatprep.subr.bf16.mxu0 0
    %321 = vmatpush2.bf16.msra.mxu0 0
    %322 = vmatprep.subr.bf16.mxu0 0
    %323 = vmatpush2.bf16.msra.mxu0 0
    %324 = vmatprep.subr.bf16.mxu0 0
    %325 = vmatpush2.bf16.msra.mxu0 0
    %326 = vmatprep.subr.bf16.mxu0 0
    %327 = vmatpush2.bf16.msra.mxu0 0
    %328 = vmatprep.mubr.bf16.mxu0 0
    %329 = vmatmul.mubr.bf16.gmra.mxu0 %v158
    %v330 = vpop.f32.mrf.mxu0
    %v331 = vadd.f32 %v295, %v330
    %v332 = vpop.f32.mrf.mxu0
    %v333 = vpop.f32.mrf.mxu0
    %v334 = vadd.f32 %v295, %v333
    %v335 = vpop.f32.mrf.mxu0
    %336 = vmatprep.mubr.bf16.mxu0 0
    %337 = vmatmul.mubr.bf16.gmra.mxu0 %v161
    %v338 = vpop.f32.mrf.mxu0
    %v339 = vadd.f32 %v295, %v338
    %v340 = vpop.f32.mrf.mxu0
    %v341 = vpop.f32.mrf.mxu0
    %v342 = vadd.f32 %v295, %v341
    %v343 = vpop.f32.mrf.mxu0
    %344 = vdwg.mxu0
    %v345 = vmax.f32 %v331, 0.0
    %v346 = vmax.f32 %v334, 0.0
    %v347 = vmax.f32 %v339, 0.0
    %v348 = vmax.f32 %v342, 0.0
    %v349 = vpack.c.bf16 %v346, %v345
    %v350 = vpack.c.bf16 %v348, %v347
    %s351 = scalar_lea.vmem [#allocation5], 16
    %v352 = vld [vmem:[%s351] sm:$0xf]
    %v353 = vld [vmem:[%s351 + $0x4] sm:$0xf]
    %v354 = vld [vmem:[%s351 + $0x8] sm:$0xf]
    %v355 = vld [vmem:[%s351 + $0xc] sm:$0xf]
    %v360 = vunpack.c.l.b16 %v352
    %v361 = vunpack.c.l.b16 %v353
    %v362 = vunpack.c.l.b16 %v354
    %v363 = vunpack.c.l.b16 %v355
    %v364 = vpack.c.b16 %v361, %v360
    %v365 = vpack.c.b16 %v363, %v362
    %v369 = vsel %vm156, %v349, 0
    %v372 = vsel %vm156, %v350, 0
    %374 = vmatprep.subr.bf16.mxu0 0
    %375 = vmatpush1.bf16.msra.mxu0 0
    %376 = vmatprep.subr.bf16.mxu0 0
    %377 = vmatpush1.bf16.msra.mxu0 0
    %378 = vmatprep.subr.bf16.mxu0 0
    %379 = vmatpush1.bf16.msra.mxu0 0
    %380 = vmatprep.subr.bf16.mxu0 0
    %381 = vmatpush1.bf16.msra.mxu0 0
    %382 = vmatprep.subr.bf16.mxu0 0
    %383 = vmatpush1.bf16.msra.mxu0 0
    %384 = vmatprep.subr.bf16.mxu0 0
    %385 = vmatpush1.bf16.msra.mxu0 0
    %386 = vmatprep.subr.bf16.mxu0 0
    %387 = vmatpush1.bf16.msra.mxu0 %v365
    %388 = vmatprep.subr.bf16.mxu0 0
    %389 = vmatpush1.bf16.msra.mxu0 %v364
    %390 = vmatprep.subr.bf16.mxu0 0
    %391 = vmatpush2.bf16.msra.mxu0 0
    %392 = vmatprep.subr.bf16.mxu0 0
    %393 = vmatpush2.bf16.msra.mxu0 0
    %394 = vmatprep.subr.bf16.mxu0 0
    %395 = vmatpush2.bf16.msra.mxu0 0
    %396 = vmatprep.subr.bf16.mxu0 0
    %397 = vmatpush2.bf16.msra.mxu0 0
    %398 = vmatprep.subr.bf16.mxu0 0
    %399 = vmatpush2.bf16.msra.mxu0 0
    %400 = vmatprep.subr.bf16.mxu0 0
    %401 = vmatpush2.bf16.msra.mxu0 0
    %402 = vmatprep.subr.bf16.mxu0 0
    %403 = vmatpush2.bf16.msra.mxu0 0
    %404 = vmatprep.subr.bf16.mxu0 0
    %405 = vmatpush2.bf16.msra.mxu0 0
    %406 = vmatprep.mubr.bf16.mxu0 0
    %407 = vmatmul.mubr.bf16.gmra.mxu0 %v369
    %v408 = vpop.f32.mrf.mxu0
    %v409 = vadd.f32 0.0, %v408
    %v410 = vpop.f32.mrf.mxu0
    %v411 = vpop.f32.mrf.mxu0
    %v412 = vadd.f32 0.0, %v411
    %v413 = vpop.f32.mrf.mxu0
    %414 = vmatprep.mubr.bf16.mxu0 0
    %415 = vmatmul.mubr.bf16.gmra.mxu0 %v372
    %v416 = vpop.f32.mrf.mxu0
    %v417 = vadd.f32 0.0, %v416
    %v418 = vpop.f32.mrf.mxu0
    %v419 = vpop.f32.mrf.mxu0
    %v420 = vadd.f32 0.0, %v419
    %v421 = vpop.f32.mrf.mxu0
    %422 = vdwg.mxu0
    %v423 = vpack.c.bf16 %v412, %v409
    %v424 = vpack.c.bf16 %v420, %v417
    %v425 = vld [vmem:[%s5 + $0x2] sm:$0x1]
    %v426 = vlaneseq
    %v427 = vshrl.u32 %v426, 7
    %v428 = vsub.s32 0, %v427
    %v429 = vrot.slane %v425, %v428
    %430 = vmatprep.subr.bf16.mxu0 0
    %431 = vmatpush1.bf16.msra.mxu0 0
    %432 = vmatprep.subr.bf16.mxu0 0
    %433 = vmatpush1.bf16.msra.mxu0 0
    %434 = vmatprep.subr.bf16.mxu0 0
    %435 = vmatpush1.bf16.msra.mxu0 0
    %436 = vmatprep.subr.bf16.mxu0 0
    %437 = vmatpush1.bf16.msra.mxu0 0
    %438 = vmatprep.subr.bf16.mxu0 0
    %439 = vmatpush1.bf16.msra.mxu0 0
    %440 = vmatprep.subr.bf16.mxu0 0
    %441 = vmatpush1.bf16.msra.mxu0 0
    %442 = vmatprep.subr.bf16.mxu0 0
    %443 = vmatpush1.bf16.msra.mxu0 %v424
    %444 = vmatprep.subr.bf16.mxu0 0
    %445 = vmatpush1.bf16.msra.mxu0 %v423
    %446 = vmatprep.subr.bf16.mxu0 0
    %447 = vmatpush2.bf16.msra.mxu0 0
    %448 = vmatprep.subr.bf16.mxu0 0
    %449 = vmatpush2.bf16.msra.mxu0 0
    %450 = vmatprep.subr.bf16.mxu0 0
    %451 = vmatpush2.bf16.msra.mxu0 0
    %452 = vmatprep.subr.bf16.mxu0 0
    %453 = vmatpush2.bf16.msra.mxu0 0
    %454 = vmatprep.subr.bf16.mxu0 0
    %455 = vmatpush2.bf16.msra.mxu0 0
    %456 = vmatprep.subr.bf16.mxu0 0
    %457 = vmatpush2.bf16.msra.mxu0 0
    %458 = vmatprep.subr.bf16.mxu0 0
    %459 = vmatpush2.bf16.msra.mxu0 0
    %460 = vmatprep.subr.bf16.mxu0 0
    %461 = vmatpush2.bf16.msra.mxu0 0
    %462 = vmatprep.mubr.bf16.mxu0 0
    %463 = vmatmul.mubr.bf16.gmra.mxu0 %v158
    %v464 = vpop.f32.mrf.mxu0
    %v465 = vadd.f32 %v429, %v464
    %v466 = vpop.f32.mrf.mxu0
    %v467 = vpop.f32.mrf.mxu0
    %v468 = vadd.f32 %v429, %v467
    %v469 = vpop.f32.mrf.mxu0
    %470 = vmatprep.mubr.bf16.mxu0 0
    %471 = vmatmul.mubr.bf16.gmra.mxu0 %v161
    %v472 = vpop.f32.mrf.mxu0
    %v473 = vadd.f32 %v429, %v472
    %v474 = vpop.f32.mrf.mxu0
    %v475 = vpop.f32.mrf.mxu0
    %v476 = vadd.f32 %v429, %v475
    %v477 = vpop.f32.mrf.mxu0
    %478 = vdwg.mxu0
    %v479 = vmax.f32 %v465, 0.0
    %v480 = vmax.f32 %v468, 0.0
    %v481 = vmax.f32 %v473, 0.0
    %v482 = vmax.f32 %v476, 0.0
    %483 = vst.msk [vmem:[#allocation7] sm:$0xff] %vm156, %v479
    %484 = vst.msk [vmem:[#allocation7 + $0x8] sm:$0xff] %vm156, %v480
    %485 = vst.msk [vmem:[#allocation7 + $0x10] sm:$0xff] %vm156, %v481
    %486 = vst.msk [vmem:[#allocation7 + $0x18] sm:$0xff] %vm156, %v482
    // Predicated region
    $region34: #{tpu_custom_call.1} parent=1 // pred_check
      _
    $region35: #{tpu_custom_call.1} parent=1 // pred_check_branch
      %488 = sbr.rel (0) target = $region37
    $region36: #{tpu_custom_call.1} parent=1 // pred_region
      %s490 = ssub.s32 512, 512
      %491 = vsyncadd [#allocation4], %s490
      %s492 = sshll.u32 [#allocation7], 4
      %s493 = int_to_ptr.vmem [resolvable:$true] %s492
      %498 = dma.vmem_to_hbm [thread:$0]  %s493, 512, %s6, [#allocation4], 128, 128, 8
    $region37: #{tpu_custom_call.1} parent=1 // pred_fallthru
      _
    // Predicated region
    $region38: #{tpu_custom_call.1} parent=1 // pred_check
      _
    $region39: #{tpu_custom_call.1} parent=1 // pred_check_branch
      %500 = sbr.rel (0) target = $region41
    $region40: #{tpu_custom_call.1} parent=1 // pred_region
      %501 = dma.done [#allocation4], 512
    $region41: #{tpu_custom_call.1} parent=1 // pred_fallthru
      _
    %502 = vsyncpa [#allocation3], 1
    %503 = vsyncpa [#allocation6], 1
    %504 = vsyncpa [#allocation4], 1

</llo_original>
